<compile_context>
chip_gen: v7x
topology: tpu7x:2x2x1
jax: 0.10.0
libtpu: 0.0.40
codegen_flags: <defaults>
</compile_context>

<pallas_src>
import functools
import math
from dataclasses import dataclass

import jax
import jax.numpy as jnp
from jax.experimental import pallas as pl
from jax.experimental.pallas import tpu as pltpu


# ----------------------------- config ---------------------------------------
@dataclass
class FusionConfig:
    voxel_sizes: tuple


@dataclass
class ModelConfig:
    occ_th: tuple
    f_maps: tuple
    layers_down: tuple
    layers_up: tuple


@dataclass
class MkdConfig:
    fusion: FusionConfig
    model: ModelConfig


# ----------------------------- tiling constants ------------------------------
LANE = 128            # lane width: voxels on the fast axis
SUB = 8               # f32 sublane tile
_X_BLOCK_BYTES = 2 * 1024 * 1024   # target size of one x block (per review: 1-4 MiB)
_VMEM_LIMIT = 32 * 1024 * 1024     # safe on v5e/v6e/v7x (v7x physical is 64 MiB/TC)


def _ceil_to(v, m):
    return (v + m - 1) // m * m


def _pick_rows(vr, c):
    """Pick TR (rows of LANE voxels per block). vr is a multiple of 8."""
    cap = max(SUB, (_X_BLOCK_BYTES // (c * LANE * 4)) // SUB * SUB)
    best = None
    t = SUB
    while t <= min(vr, cap):
        if vr % t == 0:
            best = t
        t += SUB
    if best is None:
        return vr, 1
    # keep >= 2 grid steps when possible so both v7x TensorCores get work
    if vr // best < 2:
        smaller = [t for t in range(SUB, best, SUB) if vr % t == 0 and vr // t >= 2]
        if smaller:
            best = smaller[-1]
    return best, vr // best


# ----------------------------- Pallas kernels --------------------------------
def _tsdf_base_kernel(x_ref, w_ref, tsdf_ref):
    # x_ref: (C, TR, LANE) VMEM, w_ref: (C,) f32 in SMEM, tsdf_ref: (TR, LANE)
    # 1x1x1 conv == per-voxel channel MAC; unrolled over C, pure VPU, lane-dense.
    C = x_ref.shape[0]
    acc = x_ref[0] * w_ref[0]
    for c in range(1, C):
        acc = acc + x_ref[c] * w_ref[c]
    tsdf_ref[...] = jnp.tanh(acc) * 1.05


def _tsdf_refine_kernel(x_ref, w_ref, prev_ref, tsdf_ref, mask_ref, *, occ_th):
    # x_ref: (C, TR, LANE), w_ref: (C,) SMEM, prev_ref: (TR, LANE) upsampled prev tsdf
    C = x_ref.shape[0]
    acc = x_ref[0] * w_ref[0]
    for c in range(1, C):
        acc = acc + x_ref[c] * w_ref[c]
    base = jnp.tanh(acc) * 1.05
    prev = prev_ref[...]
    trunc = jnp.abs(prev) >= occ_th                       # mask_truncated
    tsdf_ref[...] = jnp.where(trunc, jnp.sign(prev), base)
    mask_ref[...] = jnp.where(trunc, 0, 1).astype(jnp.int8)   # ~mask_truncated


def decode_base(x3d, w_vec):
    # x3d: (C, Vr, LANE), w_vec: (C,)
    C, Vr, _ = x3d.shape
    tr, steps = _pick_rows(Vr, C)
    return pl.pallas_call(
        _tsdf_base_kernel,
        out_shape=jax.ShapeDtypeStruct((Vr, LANE), jnp.float32),
        grid=(steps,),
        in_specs=[
            pl.BlockSpec((C, tr, LANE), lambda i: (0, i, 0)),
            pl.BlockSpec(memory_space=pltpu.MemorySpace.SMEM),
        ],
        out_specs=pl.BlockSpec((tr, LANE), lambda i: (i, 0)),
        compiler_params=pltpu.CompilerParams(
            dimension_semantics=("parallel",),
            vmem_limit_bytes=_VMEM_LIMIT,
        ),
    )(x3d, w_vec)


def decode_refine(x3d, w_vec, prev2d, occ_th):
    # x3d: (C, Vr, LANE), w_vec: (C,), prev2d: (Vr, LANE)
    C, Vr, _ = x3d.shape
    tr, steps = _pick_rows(Vr, C)
    kernel = functools.partial(_tsdf_refine_kernel, occ_th=float(occ_th))
    return pl.pallas_call(
        kernel,
        out_shape=(
            jax.ShapeDtypeStruct((Vr, LANE), jnp.float32),
            jax.ShapeDtypeStruct((Vr, LANE), jnp.int8),
        ),
        grid=(steps,),
        in_specs=[
            pl.BlockSpec((C, tr, LANE), lambda i: (0, i, 0)),
            pl.BlockSpec(memory_space=pltpu.MemorySpace.SMEM),
            pl.BlockSpec((tr, LANE), lambda i: (i, 0)),
        ],
        out_specs=(
            pl.BlockSpec((tr, LANE), lambda i: (i, 0)),
            pl.BlockSpec((tr, LANE), lambda i: (i, 0)),
        ),
        compiler_params=pltpu.CompilerParams(
            dimension_semantics=("parallel",),
            vmem_limit_bytes=_VMEM_LIMIT,
        ),
    )(x3d, w_vec, prev2d)


# ----------------------------- plain-JAX glue ---------------------------------
def conv3d_ndhwc(x, w, stride=1):
    # x: (N, D, H, W, Cin), w: (kd, kh, kw, Cin, Cout) -> NDHWC
    return jax.lax.conv_general_dilated(
        x, w, window_strides=(stride,) * 3, padding="SAME",
        dimension_numbers=("NDHWC", "DHWIO", "NDHWC"))


def conv3d_cmajor(x, w, stride=1):
    # x: NDHWC -> output channel-major (C, N, D, H, W) so the (C, V) flatten
    # for the decoder kernels is a free reshape (no extra XLA transpose).
    return jax.lax.conv_general_dilated(
        x, w, window_strides=(stride,) * 3, padding="SAME",
        dimension_numbers=("NDHWC", "DHWIO", "CNDHW"))


def nearest_up2(x):
    # x: (N, d, h, w) -> (N, 2d, 2h, 2w)   (F.interpolate scale_factor=2, nearest)
    x = jnp.repeat(x, 2, axis=1)
    x = jnp.repeat(x, 2, axis=2)
    x = jnp.repeat(x, 2, axis=3)
    return x


class AtlasNetPallas:
    def __init__(self, config: MkdConfig, key):
        self.config = config
        self.voxel_sizes = config.fusion.voxel_sizes
        self.occ_th = config.model.occ_th
        self.f_maps = config.model.f_maps
        c0, c1 = self.f_maps[0], self.f_maps[1]
        keys = jax.random.split(key, 3 + len(self.f_maps))

        # TODO(synk): FeatureExtractor definition is external to this module; stand-in conv.
        self.fe_w = 0.1 * jax.random.normal(keys[0], (3, 3, 3, 1, c0), jnp.float32)
        # TODO(synk): Unet3D definition is external to this module; stand-in down/fine convs
        #             producing the multi-scale pyramid [coarse(C=f_maps[1]), fine(C=f_maps[0])].
        self.down_w = 0.1 * jax.random.normal(keys[1], (3, 3, 3, c0, c1), jnp.float32)
        self.fine_w = 0.1 * jax.random.normal(keys[2], (3, 3, 3, c0, c0), jnp.float32)

        # decoders: [Conv3d(c, 1, 1, bias=False) for c in f_maps[:-1]][::-1]
        dec_channels = list(self.f_maps[:-1])[::-1]
        self.dec_ws = [
            (1.0 / c) * jax.random.normal(k, (c,), jnp.float32)
            for c, k in zip(dec_channels, keys[3:3 + len(dec_channels)])
        ]

    def forward(self, xs):
        # xs: (N, 1, D, H, W) NCDHW (PyTorch convention)
        x = jnp.transpose(xs, (0, 2, 3, 4, 1)).astype(jnp.float32)          # NDHWC
        feats = jax.nn.relu(conv3d_ndhwc(x, self.fe_w))                      # (N,D,H,W,c0)
        coarse = jax.nn.relu(conv3d_cmajor(feats, self.down_w, stride=2))    # (c1,N,D/2,H/2,W/2)
        fine = jax.nn.relu(conv3d_cmajor(feats, self.fine_w))                # (c0,N,D,H,W)
        out = [coarse, fine]  # coarse-to-fine, matches reversed decoder order

        output = {}
        mask_occupied = []
        prev_tsdf = None  # (N, d, h, w) at previous (coarser) resolution
        for i, (w_vec, feat) in enumerate(zip(self.dec_ws, out)):
            C = feat.shape[0]
            spatial = feat.shape[1:]                   # (N, d, h, w)
            V = math.prod(spatial)
            Vp = _ceil_to(V, LANE * SUB)               # pad so Vr is a multiple of 8
            x2d = feat.reshape(C, V)
            if Vp != V:
                x2d = jnp.pad(x2d, ((0, 0), (0, Vp - V)))
            x3d = x2d.reshape(C, Vp // LANE, LANE)

            if i == 0:
                tsdf_flat = decode_base(x3d, w_vec)                          # (Vr, LANE)
                tsdf = tsdf_flat.reshape(Vp)[:V].reshape(spatial)            # (N, d, h, w)
            else:
                # TODO(synk): fuse this 2x nearest upsample into the refine kernel's prev
                # BlockSpec (halved block indices + in-kernel repeat) to avoid the 8x-sized
                # HBM intermediate; kept in XLA here for guaranteed lowering.
                prev_up = nearest_up2(prev_tsdf)                             # (N, d, h, w)
                pflat = prev_up.reshape(V)
                if Vp != V:
                    pflat = jnp.pad(pflat, (0, Vp - V))
                prev2d = pflat.reshape(Vp // LANE, LANE)
                tsdf_flat, mask_flat = decode_refine(
                    x3d, w_vec, prev2d, self.occ_th[i - 1])
                tsdf = tsdf_flat.reshape(Vp)[:V].reshape(spatial)
                mask = mask_flat.reshape(Vp)[:V].reshape(spatial).astype(bool)
                mask_occupied.append(mask[:, None])                          # NCDHW
            output[f"out_tsdf_{self.voxel_sizes[i]}"] = tsdf[:, None]        # NCDHW
            prev_tsdf = tsdf
        return output, mask_occupied


# ----------------------------- main -------------------------------------------
if __name__ == "__main__":
    config = MkdConfig(
        fusion=FusionConfig(voxel_sizes=(0.2, 0.1)),
        model=ModelConfig(occ_th=(0.9,), f_maps=(8, 16, 32),
                          layers_down=(1, 1, 1), layers_up=(1, 1)),
    )
    key = jax.random.PRNGKey(0)
    net = AtlasNetPallas(config, key)

    xs = jax.random.uniform(jax.random.PRNGKey(0), (2, 1, 16, 16, 16),
                            dtype=jnp.float32, minval=-1.0, maxval=1.0)

    output, mask_occupied = net.forward(xs)
    jax.block_until_ready((output, mask_occupied))

    # sanity on shapes
    assert output["out_tsdf_0.2"].shape == (2, 1, 8, 8, 8)
    assert output["out_tsdf_0.1"].shape == (2, 1, 16, 16, 16)
    assert len(mask_occupied) == 1 and mask_occupied[0].shape == (2, 1, 16, 16, 16)
    print("KERNEL_OK")
</pallas_src>

<mosaic_0001>
module attributes {stable_mosaic.version = 11 : i64} {
  func.func @_tsdf_base_kernel(%arg0: i32, %arg1: memref<16x8x128xf32, #tpu.memory_space<vmem>>, %arg2: memref<16xf32, #tpu.memory_space<smem>>, %arg3: memref<8x128xf32, #tpu.memory_space<vmem>>) attributes {dimension_semantics = [#tpu.dimension_semantics<parallel>], iteration_bounds = array<i64: 1>, scalar_prefetch = 0 : i64, scratch_operands = 0 : i64, tpu.core_type = #tpu.core_type<tc>, window_params = [{transform_indices = @transform_0, window_bounds = array<i64: 16, 8, 128>}, {transform_indices = @transform_1, window_bounds = array<i64: 16>}, {transform_indices = @transform_2, window_bounds = array<i64: 8, 128>}]} {
    %c0 = arith.constant 0 : index
    %c0_0 = arith.constant 0 : index
    %c0_1 = arith.constant 0 : index
    %0 = vector.load %arg1[%c0, %c0_0, %c0_1] : memref<16x8x128xf32, #tpu.memory_space<vmem>>, vector<1x8x128xf32>
    %1 = vector.shape_cast %0 : vector<1x8x128xf32> to vector<8x128xf32>
    %c0_2 = arith.constant 0 : index
    %2 = memref.load %arg2[%c0_2] : memref<16xf32, #tpu.memory_space<smem>>
    %3 = vector.broadcast %2 : f32 to vector<8x128xf32>
    %4 = arith.mulf %1, %3 : vector<8x128xf32>
    %c1 = arith.constant 1 : index
    %c0_3 = arith.constant 0 : index
    %c0_4 = arith.constant 0 : index
    %5 = vector.load %arg1[%c1, %c0_3, %c0_4] : memref<16x8x128xf32, #tpu.memory_space<vmem>>, vector<1x8x128xf32>
    %6 = vector.shape_cast %5 : vector<1x8x128xf32> to vector<8x128xf32>
    %c1_5 = arith.constant 1 : index
    %7 = memref.load %arg2[%c1_5] : memref<16xf32, #tpu.memory_space<smem>>
    %8 = vector.broadcast %7 : f32 to vector<8x128xf32>
    %9 = arith.mulf %6, %8 : vector<8x128xf32>
    %10 = arith.addf %4, %9 : vector<8x128xf32>
    %c2 = arith.constant 2 : index
    %c0_6 = arith.constant 0 : index
    %c0_7 = arith.constant 0 : index
    %11 = vector.load %arg1[%c2, %c0_6, %c0_7] : memref<16x8x128xf32, #tpu.memory_space<vmem>>, vector<1x8x128xf32>
    %12 = vector.shape_cast %11 : vector<1x8x128xf32> to vector<8x128xf32>
    %c2_8 = arith.constant 2 : index
    %13 = memref.load %arg2[%c2_8] : memref<16xf32, #tpu.memory_space<smem>>
    %14 = vector.broadcast %13 : f32 to vector<8x128xf32>
    %15 = arith.mulf %12, %14 : vector<8x128xf32>
    %16 = arith.addf %10, %15 : vector<8x128xf32>
    %c3 = arith.constant 3 : index
    %c0_9 = arith.constant 0 : index
    %c0_10 = arith.constant 0 : index
    %17 = vector.load %arg1[%c3, %c0_9, %c0_10] : memref<16x8x128xf32, #tpu.memory_space<vmem>>, vector<1x8x128xf32>
    %18 = vector.shape_cast %17 : vector<1x8x128xf32> to vector<8x128xf32>
    %c3_11 = arith.constant 3 : index
    %19 = memref.load %arg2[%c3_11] : memref<16xf32, #tpu.memory_space<smem>>
    %20 = vector.broadcast %19 : f32 to vector<8x128xf32>
    %21 = arith.mulf %18, %20 : vector<8x128xf32>
    %22 = arith.addf %16, %21 : vector<8x128xf32>
    %c4 = arith.constant 4 : index
    %c0_12 = arith.constant 0 : index
    %c0_13 = arith.constant 0 : index
    %23 = vector.load %arg1[%c4, %c0_12, %c0_13] : memref<16x8x128xf32, #tpu.memory_space<vmem>>, vector<1x8x128xf32>
    %24 = vector.shape_cast %23 : vector<1x8x128xf32> to vector<8x128xf32>
    %c4_14 = arith.constant 4 : index
    %25 = memref.load %arg2[%c4_14] : memref<16xf32, #tpu.memory_space<smem>>
    %26 = vector.broadcast %25 : f32 to vector<8x128xf32>
    %27 = arith.mulf %24, %26 : vector<8x128xf32>
    %28 = arith.addf %22, %27 : vector<8x128xf32>
    %c5 = arith.constant 5 : index
    %c0_15 = arith.constant 0 : index
    %c0_16 = arith.constant 0 : index
    %29 = vector.load %arg1[%c5, %c0_15, %c0_16] : memref<16x8x128xf32, #tpu.memory_space<vmem>>, vector<1x8x128xf32>
    %30 = vector.shape_cast %29 : vector<1x8x128xf32> to vector<8x128xf32>
    %c5_17 = arith.constant 5 : index
    %31 = memref.load %arg2[%c5_17] : memref<16xf32, #tpu.memory_space<smem>>
    %32 = vector.broadcast %31 : f32 to vector<8x128xf32>
    %33 = arith.mulf %30, %32 : vector<8x128xf32>
    %34 = arith.addf %28, %33 : vector<8x128xf32>
    %c6 = arith.constant 6 : index
    %c0_18 = arith.constant 0 : index
    %c0_19 = arith.constant 0 : index
    %35 = vector.load %arg1[%c6, %c0_18, %c0_19] : memref<16x8x128xf32, #tpu.memory_space<vmem>>, vector<1x8x128xf32>
    %36 = vector.shape_cast %35 : vector<1x8x128xf32> to vector<8x128xf32>
    %c6_20 = arith.constant 6 : index
    %37 = memref.load %arg2[%c6_20] : memref<16xf32, #tpu.memory_space<smem>>
    %38 = vector.broadcast %37 : f32 to vector<8x128xf32>
    %39 = arith.mulf %36, %38 : vector<8x128xf32>
    %40 = arith.addf %34, %39 : vector<8x128xf32>
    %c7 = arith.constant 7 : index
    %c0_21 = arith.constant 0 : index
    %c0_22 = arith.constant 0 : index
    %41 = vector.load %arg1[%c7, %c0_21, %c0_22] : memref<16x8x128xf32, #tpu.memory_space<vmem>>, vector<1x8x128xf32>
    %42 = vector.shape_cast %41 : vector<1x8x128xf32> to vector<8x128xf32>
    %c7_23 = arith.constant 7 : index
    %43 = memref.load %arg2[%c7_23] : memref<16xf32, #tpu.memory_space<smem>>
    %44 = vector.broadcast %43 : f32 to vector<8x128xf32>
    %45 = arith.mulf %42, %44 : vector<8x128xf32>
    %46 = arith.addf %40, %45 : vector<8x128xf32>
    %c8 = arith.constant 8 : index
    %c0_24 = arith.constant 0 : index
    %c0_25 = arith.constant 0 : index
    %47 = vector.load %arg1[%c8, %c0_24, %c0_25] : memref<16x8x128xf32, #tpu.memory_space<vmem>>, vector<1x8x128xf32>
    %48 = vector.shape_cast %47 : vector<1x8x128xf32> to vector<8x128xf32>
    %c8_26 = arith.constant 8 : index
    %49 = memref.load %arg2[%c8_26] : memref<16xf32, #tpu.memory_space<smem>>
    %50 = vector.broadcast %49 : f32 to vector<8x128xf32>
    %51 = arith.mulf %48, %50 : vector<8x128xf32>
    %52 = arith.addf %46, %51 : vector<8x128xf32>
    %c9 = arith.constant 9 : index
    %c0_27 = arith.constant 0 : index
    %c0_28 = arith.constant 0 : index
    %53 = vector.load %arg1[%c9, %c0_27, %c0_28] : memref<16x8x128xf32, #tpu.memory_space<vmem>>, vector<1x8x128xf32>
    %54 = vector.shape_cast %53 : vector<1x8x128xf32> to vector<8x128xf32>
    %c9_29 = arith.constant 9 : index
    %55 = memref.load %arg2[%c9_29] : memref<16xf32, #tpu.memory_space<smem>>
    %56 = vector.broadcast %55 : f32 to vector<8x128xf32>
    %57 = arith.mulf %54, %56 : vector<8x128xf32>
    %58 = arith.addf %52, %57 : vector<8x128xf32>
    %c10 = arith.constant 10 : index
    %c0_30 = arith.constant 0 : index
    %c0_31 = arith.constant 0 : index
    %59 = vector.load %arg1[%c10, %c0_30, %c0_31] : memref<16x8x128xf32, #tpu.memory_space<vmem>>, vector<1x8x128xf32>
    %60 = vector.shape_cast %59 : vector<1x8x128xf32> to vector<8x128xf32>
    %c10_32 = arith.constant 10 : index
    %61 = memref.load %arg2[%c10_32] : memref<16xf32, #tpu.memory_space<smem>>
    %62 = vector.broadcast %61 : f32 to vector<8x128xf32>
    %63 = arith.mulf %60, %62 : vector<8x128xf32>
    %64 = arith.addf %58, %63 : vector<8x128xf32>
    %c11 = arith.constant 11 : index
    %c0_33 = arith.constant 0 : index
    %c0_34 = arith.constant 0 : index
    %65 = vector.load %arg1[%c11, %c0_33, %c0_34] : memref<16x8x128xf32, #tpu.memory_space<vmem>>, vector<1x8x128xf32>
    %66 = vector.shape_cast %65 : vector<1x8x128xf32> to vector<8x128xf32>
    %c11_35 = arith.constant 11 : index
    %67 = memref.load %arg2[%c11_35] : memref<16xf32, #tpu.memory_space<smem>>
    %68 = vector.broadcast %67 : f32 to vector<8x128xf32>
    %69 = arith.mulf %66, %68 : vector<8x128xf32>
    %70 = arith.addf %64, %69 : vector<8x128xf32>
    %c12 = arith.constant 12 : index
    %c0_36 = arith.constant 0 : index
    %c0_37 = arith.constant 0 : index
    %71 = vector.load %arg1[%c12, %c0_36, %c0_37] : memref<16x8x128xf32, #tpu.memory_space<vmem>>, vector<1x8x128xf32>
    %72 = vector.shape_cast %71 : vector<1x8x128xf32> to vector<8x128xf32>
    %c12_38 = arith.constant 12 : index
    %73 = memref.load %arg2[%c12_38] : memref<16xf32, #tpu.memory_space<smem>>
    %74 = vector.broadcast %73 : f32 to vector<8x128xf32>
    %75 = arith.mulf %72, %74 : vector<8x128xf32>
    %76 = arith.addf %70, %75 : vector<8x128xf32>
    %c13 = arith.constant 13 : index
    %c0_39 = arith.constant 0 : index
    %c0_40 = arith.constant 0 : index
    %77 = vector.load %arg1[%c13, %c0_39, %c0_40] : memref<16x8x128xf32, #tpu.memory_space<vmem>>, vector<1x8x128xf32>
    %78 = vector.shape_cast %77 : vector<1x8x128xf32> to vector<8x128xf32>
    %c13_41 = arith.constant 13 : index
    %79 = memref.load %arg2[%c13_41] : memref<16xf32, #tpu.memory_space<smem>>
    %80 = vector.broadcast %79 : f32 to vector<8x128xf32>
    %81 = arith.mulf %78, %80 : vector<8x128xf32>
    %82 = arith.addf %76, %81 : vector<8x128xf32>
    %c14 = arith.constant 14 : index
    %c0_42 = arith.constant 0 : index
    %c0_43 = arith.constant 0 : index
    %83 = vector.load %arg1[%c14, %c0_42, %c0_43] : memref<16x8x128xf32, #tpu.memory_space<vmem>>, vector<1x8x128xf32>
    %84 = vector.shape_cast %83 : vector<1x8x128xf32> to vector<8x128xf32>
    %c14_44 = arith.constant 14 : index
    %85 = memref.load %arg2[%c14_44] : memref<16xf32, #tpu.memory_space<smem>>
    %86 = vector.broadcast %85 : f32 to vector<8x128xf32>
    %87 = arith.mulf %84, %86 : vector<8x128xf32>
    %88 = arith.addf %82, %87 : vector<8x128xf32>
    %c15 = arith.constant 15 : index
    %c0_45 = arith.constant 0 : index
    %c0_46 = arith.constant 0 : index
    %89 = vector.load %arg1[%c15, %c0_45, %c0_46] : memref<16x8x128xf32, #tpu.memory_space<vmem>>, vector<1x8x128xf32>
    %90 = vector.shape_cast %89 : vector<1x8x128xf32> to vector<8x128xf32>
    %c15_47 = arith.constant 15 : index
    %91 = memref.load %arg2[%c15_47] : memref<16xf32, #tpu.memory_space<smem>>
    %92 = vector.broadcast %91 : f32 to vector<8x128xf32>
    %93 = arith.mulf %90, %92 : vector<8x128xf32>
    %94 = arith.addf %88, %93 : vector<8x128xf32>
    %95 = math.tanh %94 : vector<8x128xf32>
    %cst = arith.constant 1.050000e+00 : f32
    %96 = vector.broadcast %cst : f32 to vector<8x128xf32>
    %97 = arith.mulf %95, %96 : vector<8x128xf32>
    %c0_48 = arith.constant 0 : index
    %c0_49 = arith.constant 0 : index
    %98 = vector.load %arg3[%c0_48, %c0_49] : memref<8x128xf32, #tpu.memory_space<vmem>>, vector<8x128xf32>
    tpu.vector_store %arg3[%c0_48, %c0_49], %97 {strides = array<i32>} : memref<8x128xf32, #tpu.memory_space<vmem>>, vector<8x128xf32>,
    return
  }
  func.func @transform_0(%arg0: i32) -> (i32, i32, i32) {
    %c0_i32 = arith.constant 0 : i32
    %c0_i32_0 = arith.constant 0 : i32
    %c0_i32_1 = arith.constant 0 : i32
    return %c0_i32, %arg0, %c0_i32_0 : i32, i32, i32
  }
  func.func @transform_1(%arg0: i32) -> i32 {
    %c0_i32 = arith.constant 0 : i32
    %c0_i32_0 = arith.constant 0 : i32
    return %c0_i32 : i32
  }
  func.func @transform_2(%arg0: i32) -> (i32, i32) {
    %c0_i32 = arith.constant 0 : i32
    %c0_i32_0 = arith.constant 0 : i32
    return %arg0, %c0_i32 : i32, i32
  }
}

</mosaic_0001>

<llo_original>
// kernel: tpu_custom_call.1
$region0: #{tpu_custom_call.1}
  #allocation0 [shape = 'u32[]', space=smem, size = 0x4, offset = 0x4, fixed_abs, tag = 'smem constant byte address 0x4 - core index']
  #allocation1 [shape = 'u32[144,128]{1,0:T(1,128)}', space=vmem, size = 0x12000, scoped, tag = 'internal scratch']
  %s0 = inlined_call_operand.hbm [shape: f32[16,8,128], index: 0, kind: input, shape index: {}]
  %s1 = inlined_call_operand.vmem [shape: f32[16], index: 1, kind: input, shape index: {}]
  %s2 = inlined_call_operand.hbm [shape: f32[8,128], index: 2, kind: output, shape index: {}]
  %s3 = sld [smem:[#allocation0]]
  $region26: #{tpu_custom_call.1} parent=0
    _
  %s5 = ssub.s32 1, %s3
  %s6 = scalar_select 0, %s5, %s3
  $region1: #{tpu_custom_call.1} parent=0
    #allocation2 [shape = 'u8[65536]{0}', space=vmem, size = 0x10000, scoped, tag = 'input window, operand 0, single buffered']
    #allocation3 [shape = 's32[1]{0}', space=sflag, size = 0x4, scoped, tag = 'scoped memory for tpu_custom_call.1']
    #allocation4 [shape = 's32[1]{0}', space=sflag, size = 0x4, scoped, tag = 'scoped memory for tpu_custom_call.1']
    #allocation5 [shape = 's32[1]{0}', space=sflag, size = 0x4, scoped, tag = 'scoped memory for tpu_custom_call.1']
    #allocation6 [shape = 'u8[512]{0}', space=smem, size = 0x200, scoped, tag = 'input window, operand 1, single buffered']
    #allocation7 [shape = 'u8[4096]{0}', space=vmem, size = 0x1000, scoped, tag = 'output window, operand 0, single buffered']
    %7 = vsyncpa [#allocation3], 0
    %8 = vsyncpa [#allocation5], 0
    %9 = vsyncpa [#allocation4], 0
    // Predicated region
    $region2: #{tpu_custom_call.1} parent=1 // pred_check
      _
    $region3: #{tpu_custom_call.1} parent=1 // pred_check_branch
      %11 = sbr.rel (0) target = $region5
    $region4: #{tpu_custom_call.1} parent=1 // pred_region
      %s13 = ssub.s32 2048, 2048
      %14 = vsyncadd [#allocation3], %s13
      %s15 = sshll.u32 [#allocation2], 4
      %s16 = int_to_ptr.vmem [resolvable:$true] %s15
      %21 = dma.hbm_to_vmem [thread:$0]  %s0, 2048, %s16, [#allocation3], 128, 128, 8
    $region5: #{tpu_custom_call.1} parent=1 // pred_fallthru
      _
    // Predicated region
    $region6: #{tpu_custom_call.1} parent=1 // pred_check
      _
    $region7: #{tpu_custom_call.1} parent=1 // pred_check_branch
      %23 = sbr.rel (0) target = $region9
    $region8: #{tpu_custom_call.1} parent=1 // pred_region
      %s25 = ssub.s32 16, 16
      %26 = vsyncadd [#allocation5], %s25
      %s28 = sshll.u32 %s1, 4
      %s29 = int_to_ptr.vmem [resolvable:$true] %s28
      %31 = dma.vmem_to_smem %s29, 16, [#allocation6], [#allocation5]
    $region9: #{tpu_custom_call.1} parent=1 // pred_fallthru
      _
    // Predicated region
    $region10: #{tpu_custom_call.1} parent=1 // pred_check
      _
    $region11: #{tpu_custom_call.1} parent=1 // pred_check_branch
      %33 = sbr.rel (0) target = $region13
    $region12: #{tpu_custom_call.1} parent=1 // pred_region
      %34 = dma.done [#allocation3], 2048
    $region13: #{tpu_custom_call.1} parent=1 // pred_fallthru
      _
    // Predicated region
    $region14: #{tpu_custom_call.1} parent=1 // pred_check
      _
    $region15: #{tpu_custom_call.1} parent=1 // pred_check_branch
      %36 = sbr.rel (0) target = $region17
    $region16: #{tpu_custom_call.1} parent=1 // pred_region
      %37 = dma.done [#allocation5], 16
    $region17: #{tpu_custom_call.1} parent=1 // pred_fallthru
      _
    %38 = sfence
    %v39 = vld [vmem:[#allocation2] sm:$0xff]
    %s40 = sld [smem:[#allocation6]]
    %v41 = vstv %s40
    %v42 = vmul.f32 %v39, %v41
    %s43 = scalar_lea.vmem [#allocation2], 8
    %v44 = vld [vmem:[%s43] sm:$0xff]
    %s45 = sld [smem:[#allocation6 + $0x1]]
    %v46 = vstv %s45
    %v47 = vmul.f32 %v44, %v46
    %v48 = vadd.f32 %v42, %v47
    %s49 = scalar_lea.vmem [#allocation2], 16
    %v50 = vld [vmem:[%s49] sm:$0xff]
    %s51 = sld [smem:[#allocation6 + $0x2]]
    %v52 = vstv %s51
    %v53 = vmul.f32 %v50, %v52
    %v54 = vadd.f32 %v48, %v53
    %s55 = scalar_lea.vmem [#allocation2], 24
    %v56 = vld [vmem:[%s55] sm:$0xff]
    %s57 = sld [smem:[#allocation6 + $0x3]]
    %v58 = vstv %s57
    %v59 = vmul.f32 %v56, %v58
    %v60 = vadd.f32 %v54, %v59
    %s61 = scalar_lea.vmem [#allocation2], 32
    %v62 = vld [vmem:[%s61] sm:$0xff]
    %s63 = sld [smem:[#allocation6 + $0x4]]
    %v64 = vstv %s63
    %v65 = vmul.f32 %v62, %v64
    %v66 = vadd.f32 %v60, %v65
    %s67 = scalar_lea.vmem [#allocation2], 40
    %v68 = vld [vmem:[%s67] sm:$0xff]
    %s69 = sld [smem:[#allocation6 + $0x5]]
    %v70 = vstv %s69
    %v71 = vmul.f32 %v68, %v70
    %v72 = vadd.f32 %v66, %v71
    %s73 = scalar_lea.vmem [#allocation2], 48
    %v74 = vld [vmem:[%s73] sm:$0xff]
    %s75 = sld [smem:[#allocation6 + $0x6]]
    %v76 = vstv %s75
    %v77 = vmul.f32 %v74, %v76
    %v78 = vadd.f32 %v72, %v77
    %s79 = scalar_lea.vmem [#allocation2], 56
    %v80 = vld [vmem:[%s79] sm:$0xff]
    %s81 = sld [smem:[#allocation6 + $0x7]]
    %v82 = vstv %s81
    %v83 = vmul.f32 %v80, %v82
    %v84 = vadd.f32 %v78, %v83
    %s85 = scalar_lea.vmem [#allocation2], 64
    %v86 = vld [vmem:[%s85] sm:$0xff]
    %s87 = sld [smem:[#allocation6 + $0x8]]
    %v88 = vstv %s87
    %v89 = vmul.f32 %v86, %v88
    %v90 = vadd.f32 %v84, %v89
    %s91 = scalar_lea.vmem [#allocation2], 72
    %v92 = vld [vmem:[%s91] sm:$0xff]
    %s93 = sld [smem:[#allocation6 + $0x9]]
    %v94 = vstv %s93
    %v95 = vmul.f32 %v92, %v94
    %v96 = vadd.f32 %v90, %v95
    %s97 = scalar_lea.vmem [#allocation2], 80
    %v98 = vld [vmem:[%s97] sm:$0xff]
    %s99 = sld [smem:[#allocation6 + $0xa]]
    %v100 = vstv %s99
    %v101 = vmul.f32 %v98, %v100
    %v102 = vadd.f32 %v96, %v101
    %s103 = scalar_lea.vmem [#allocation2], 88
    %v104 = vld [vmem:[%s103] sm:$0xff]
    %s105 = sld [smem:[#allocation6 + $0xb]]
    %v106 = vstv %s105
    %v107 = vmul.f32 %v104, %v106
    %v108 = vadd.f32 %v102, %v107
    %s109 = scalar_lea.vmem [#allocation2], 96
    %v110 = vld [vmem:[%s109] sm:$0xff]
    %s111 = sld [smem:[#allocation6 + $0xc]]
    %v112 = vstv %s111
    %v113 = vmul.f32 %v110, %v112
    %v114 = vadd.f32 %v108, %v113
    %s115 = scalar_lea.vmem [#allocation2], 104
    %v116 = vld [vmem:[%s115] sm:$0xff]
    %s117 = sld [smem:[#allocation6 + $0xd]]
    %v118 = vstv %s117
    %v119 = vmul.f32 %v116, %v118
    %v120 = vadd.f32 %v114, %v119
    %s121 = scalar_lea.vmem [#allocation2], 112
    %v122 = vld [vmem:[%s121] sm:$0xff]
    %s123 = sld [smem:[#allocation6 + $0xe]]
    %v124 = vstv %s123
    %v125 = vmul.f32 %v122, %v124
    %v126 = vadd.f32 %v120, %v125
    %s127 = scalar_lea.vmem [#allocation2], 120
    %v128 = vld [vmem:[%s127] sm:$0xff]
    %s129 = sld [smem:[#allocation6 + $0xf]]
    %v130 = vstv %s129
    %v131 = vmul.f32 %v128, %v130
    %v132 = vadd.f32 %v126, %v131
    %v133 = vtanh.pop %v132
    %v134 = vmul.f32 %v133, 1.05
    %135 = vst [vmem:[#allocation7] sm:$0xff] %v134
    // Predicated region
    $region18: #{tpu_custom_call.1} parent=1 // pred_check
      _
    $region19: #{tpu_custom_call.1} parent=1 // pred_check_branch
      %137 = sbr.rel (0) target = $region21
    $region20: #{tpu_custom_call.1} parent=1 // pred_region
      %s139 = ssub.s32 128, 128
      %140 = vsyncadd [#allocation4], %s139
      %s142 = sshll.u32 [#allocation7], 4
      %s143 = int_to_ptr.vmem [resolvable:$true] %s142
      %145 = dma.vmem_to_hbm [thread:$0]  %s143, 128, %s2, [#allocation4]
    $region21: #{tpu_custom_call.1} parent=1 // pred_fallthru
      _
    // Predicated region
    $region22: #{tpu_custom_call.1} parent=1 // pred_check
      _
    $region23: #{tpu_custom_call.1} parent=1 // pred_check_branch
      %147 = sbr.rel (0) target = $region25
    $region24: #{tpu_custom_call.1} parent=1 // pred_region
      %148 = dma.done [#allocation4], 128
    $region25: #{tpu_custom_call.1} parent=1 // pred_fallthru
      _
    %149 = vsyncpa [#allocation3], 1
    %150 = vsyncpa [#allocation4], 1
    %151 = vsyncpa [#allocation5], 1

</llo_original>
